<compile_context>
chip_gen: v5e
topology: v5e:2x2
jax: 0.10.0
libtpu: 0.0.40
codegen_flags: <defaults>
</compile_context>

<pallas_src>
import functools

import jax
import jax.numpy as jnp
from jax.experimental import pallas as pl
from jax.experimental.pallas import tpu as pltpu


def _mask_node_feat_kernel(fill_ref, bits_ref, x_ref, o_ref, *, threshold):
    """Purely elementwise masked-fill over one row tile.

    fill_ref : SMEM (1, 1) f32    -- scalar fill value (global mean or 0)
    bits_ref : VMEM (1, F) uint32 -- per-column random bits (same for all tiles)
    x_ref    : VMEM (TN, F)       -- node-feature row tile
    o_ref    : VMEM (TN, F)       -- masked row tile
    """
    # keep column with probability (1 - p): masked iff bits < floor(p * 2^32)
    keep = bits_ref[...] >= jnp.uint32(threshold)          # (1, F) bool
    fill = fill_ref[0, 0]                                   # f32 scalar
    x = x_ref[...]
    o_ref[...] = jnp.where(keep, x, fill.astype(x.dtype))


def _pick_tile_n(n, f, itemsize):
    """Largest row tile whose double-buffered in+out blocks fit a safe VMEM budget."""
    budget = 8 * 1024 * 1024                 # ~8 MiB -> fits v5e's 16 MiB scoped VMEM
    per_row = 4 * f * itemsize               # 2 bufs (in) + 2 bufs (out) per row
    tile = max(8, min(n, budget // max(per_row, 1)))
    if tile < n:
        tile = max(8, (tile // 8) * 8)       # sublane-aligned when not full extent
    return tile


def mask_node_feat(x, seed, *, p=0.05, fill_value="mean"):
    """Pallas wrapper: returns masked node features (same shape/dtype as x)."""
    n, f = x.shape
    # TODO(synk): if F is not a multiple of 128, pad F to stay lane-dense on the store path.

    # Hoisted scalar fill value (mean over ALL of x, regardless of tiling).
    if fill_value == "zero":
        fill = jnp.zeros((1, 1), dtype=jnp.float32)
    else:
        fill = jnp.mean(x.astype(jnp.float32)).reshape(1, 1)

    # Per-column random bits, drawn once on the host so every row tile sees the
    # identical column mask (column-consistent masking under tiling).
    key = jax.random.PRNGKey(seed)
    bits = jax.random.bits(key, (1, f), dtype=jnp.uint32)
    threshold = min(int(float(p) * (2 ** 32)), 2 ** 32 - 1)

    tile_n = _pick_tile_n(n, f, x.dtype.itemsize)
    grid = (pl.cdiv(n, tile_n),)

    kernel = functools.partial(_mask_node_feat_kernel, threshold=threshold)
    return pl.pallas_call(
        kernel,
        out_shape=jax.ShapeDtypeStruct((n, f), x.dtype),
        grid=grid,
        in_specs=[
            pl.BlockSpec(memory_space=pltpu.MemorySpace.SMEM),      # fill scalar
            pl.BlockSpec((1, f), lambda i: (0, 0)),                 # column bits
            pl.BlockSpec((tile_n, f), lambda i: (i, 0)),            # x row tile
        ],
        out_specs=pl.BlockSpec((tile_n, f), lambda i: (i, 0)),
        compiler_params=pltpu.CompilerParams(
            dimension_semantics=("parallel",),                      # v7x megacore split
        ),
    )(fill, bits, x)


def mask_node_feat_forward(
    x, edge_index, edge_attr=None, batch=None, *, seed=0, p=0.05, fill_value="mean"
):
    """Mirrors MaskNodeFeat.forward: graph structure passes through untouched."""
    x_masked = mask_node_feat(x, seed, p=p, fill_value=fill_value)
    return (x_masked, edge_index, edge_attr, batch, None)


if __name__ == "__main__":
    key = jax.random.PRNGKey(0)
    kx, ke = jax.random.split(key)

    num_nodes, num_feats, num_edges = 64, 128, 256
    x = jax.random.normal(kx, (num_nodes, num_feats), dtype=jnp.float32)
    edge_index = jax.random.randint(
        ke, (2, num_edges), minval=0, maxval=num_nodes, dtype=jnp.int32
    )

    x_out, ei_out, ea_out, b_out, extra = mask_node_feat_forward(
        x, edge_index, seed=0, p=0.05, fill_value="mean"
    )
    jax.block_until_ready(x_out)

    # sanity: shape/dtype preserved, every column is either untouched or equal
    # to the global mean of x.
    assert x_out.shape == x.shape and x_out.dtype == x.dtype
    assert ei_out is edge_index and ea_out is None and b_out is None and extra is None
    mean_val = jnp.mean(x)
    col_is_masked = jnp.all(jnp.isclose(x_out, mean_val), axis=0)
    col_is_kept = jnp.all(x_out == x, axis=0)
    assert bool(jnp.all(col_is_masked | col_is_kept))

    print("KERNEL_OK")
</pallas_src>

<mosaic_0001>
module attributes {stable_mosaic.version = 11 : i64} {
  func.func @_mask_node_feat_kernel(%arg0: i32, %arg1: memref<1x1xf32, #tpu.memory_space<smem>>, %arg2: memref<1x128xi32, #tpu.memory_space<vmem>>, %arg3: memref<64x128xf32, #tpu.memory_space<vmem>>, %arg4: memref<64x128xf32, #tpu.memory_space<vmem>>) attributes {dimension_semantics = [#tpu.dimension_semantics<parallel>], iteration_bounds = array<i64: 1>, scalar_prefetch = 0 : i64, scratch_operands = 0 : i64, tpu.core_type = #tpu.core_type<tc>, window_params = [{transform_indices = @transform_0, window_bounds = array<i64: 1, 1>}, {pipeline_mode = #tpu.pipeline_mode<synchronous>, transform_indices = @transform_1, window_bounds = array<i64: 1, 128>}, {transform_indices = @transform_2, window_bounds = array<i64: 64, 128>}, {transform_indices = @transform_3, window_bounds = array<i64: 64, 128>}]} {
    %c0 = arith.constant 0 : index
    %c0_0 = arith.constant 0 : index
    %0 = vector.load %arg2[%c0, %c0_0] : memref<1x128xi32, #tpu.memory_space<vmem>>, vector<1x128xi32>
    %c214748364_i32 = arith.constant 214748364 : i32
    %1 = vector.broadcast %c214748364_i32 : i32 to vector<1x128xi32>
    %2 = arith.cmpi uge, %0, %1 : vector<1x128xi32>
    %c0_1 = arith.constant 0 : index
    %c0_2 = arith.constant 0 : index
    %3 = memref.load %arg1[%c0_1, %c0_2] : memref<1x1xf32, #tpu.memory_space<smem>>
    %c0_3 = arith.constant 0 : index
    %c0_4 = arith.constant 0 : index
    %4 = vector.load %arg3[%c0_3, %c0_4] : memref<64x128xf32, #tpu.memory_space<vmem>>, vector<64x128xf32>
    %5 = vector.shape_cast %2 : vector<1x128xi1> to vector<1x128xi1>
    %6 = vector.broadcast %5 : vector<1x128xi1> to vector<64x128xi1>
    %7 = vector.broadcast %3 : f32 to vector<64x128xf32>
    %8 = arith.select %6, %4, %7 : vector<64x128xi1>, vector<64x128xf32>
    %c0_5 = arith.constant 0 : index
    %c0_6 = arith.constant 0 : index
    %9 = vector.load %arg4[%c0_5, %c0_6] : memref<64x128xf32, #tpu.memory_space<vmem>>, vector<64x128xf32>
    tpu.vector_store %arg4[%c0_5, %c0_6], %8 {strides = array<i32>} : memref<64x128xf32, #tpu.memory_space<vmem>>, vector<64x128xf32>,
    return
  }
  func.func @transform_0(%arg0: i32) -> (i32, i32) {
    %c0_i32 = arith.constant 0 : i32
    %c0_i32_0 = arith.constant 0 : i32
    %c0_i32_1 = arith.constant 0 : i32
    return %c0_i32, %c0_i32_0 : i32, i32
  }
  func.func @transform_1(%arg0: i32) -> (i32, i32) {
    %c0_i32 = arith.constant 0 : i32
    %c0_i32_0 = arith.constant 0 : i32
    %c0_i32_1 = arith.constant 0 : i32
    return %c0_i32, %c0_i32_0 : i32, i32
  }
  func.func @transform_2(%arg0: i32) -> (i32, i32) {
    %c0_i32 = arith.constant 0 : i32
    %c0_i32_0 = arith.constant 0 : i32
    return %arg0, %c0_i32 : i32, i32
  }
  func.func @transform_3(%arg0: i32) -> (i32, i32) {
    %c0_i32 = arith.constant 0 : i32
    %c0_i32_0 = arith.constant 0 : i32
    return %arg0, %c0_i32 : i32, i32
  }
}

</mosaic_0001>

<llo_original>
// kernel: tpu_custom_call.1
$region0: #{tpu_custom_call.1}
  #allocation0 [shape = 'u32[]', space=smem, size = 0x4, offset = 0x4, fixed_abs, tag = 'smem constant byte address 0x4 - core index']
  #allocation1 [shape = 'u32[72,128]{1,0:T(1,128)}', space=vmem, size = 0x9000, scoped, tag = 'internal scratch']
  #allocation2 [shape = 'f32[1,1]{1,0:T(1,128)S(6)}', space=smem, size = 0x200, scoped, tag = 'scoped memory for tpu_custom_call.1']
  %s0 = inlined_call_operand.<no memory space> [shape: f32[1,1], index: 0, kind: input, shape index: {}]
  %s1 = inlined_call_operand.vmem [shape: u32[1,128], index: 1, kind: input, shape index: {}]
  %s2 = inlined_call_operand.hbm [shape: f32[64,128], index: 2, kind: input, shape index: {}]
  %s3 = inlined_call_operand.hbm [shape: f32[64,128], index: 3, kind: output, shape index: {}]
  %s4 = sld [smem:[#allocation0]]
  $region26: #{tpu_custom_call.1} parent=0
    _
  %s6 = ssub.s32 1, %s4
  %s7 = scalar_select 0, %s6, %s4
  %8 = sst [smem:[#allocation2]] %s0
  $region1: #{tpu_custom_call.1} parent=0
    #allocation3 [shape = 'u8[32768]{0}', space=vmem, size = 0x8000, scoped, tag = 'input window, operand 2, single buffered']
    #allocation4 [shape = 's32[1]{0}', space=sflag, size = 0x4, scoped, tag = 'scoped memory for tpu_custom_call.1']
    #allocation5 [shape = 's32[1]{0}', space=sflag, size = 0x4, scoped, tag = 'scoped memory for tpu_custom_call.1']
    #allocation6 [shape = 'u8[32768]{0}', space=vmem, size = 0x8000, scoped, tag = 'output window, operand 0, single buffered']
    %9 = vsyncpa [#allocation4], 0
    %10 = vsyncpa [#allocation5], 0
    // Predicated region
    $region2: #{tpu_custom_call.1} parent=1 // pred_check
      _
    $region3: #{tpu_custom_call.1} parent=1 // pred_check_branch
      %12 = sbr.rel (0) target = $region5
    $region4: #{tpu_custom_call.1} parent=1 // pred_region
      _
    $region5: #{tpu_custom_call.1} parent=1 // pred_fallthru
      _
    // Predicated region
    $region6: #{tpu_custom_call.1} parent=1 // pred_check
      _
    $region7: #{tpu_custom_call.1} parent=1 // pred_check_branch
      %14 = sbr.rel (0) target = $region9
    $region8: #{tpu_custom_call.1} parent=1 // pred_region
      _
    $region9: #{tpu_custom_call.1} parent=1 // pred_fallthru
      _
    // Predicated region
    $region10: #{tpu_custom_call.1} parent=1 // pred_check
      _
    $region11: #{tpu_custom_call.1} parent=1 // pred_check_branch
      %16 = sbr.rel (0) target = $region13
    $region12: #{tpu_custom_call.1} parent=1 // pred_region
      %18 = vsyncadd [#allocation4], 0
      %s19 = sshll.u32 %s2, 4
      %s20 = int_to_ptr.hbm [resolvable:$true] %s19
      %s21 = sshll.u32 [#allocation3], 4
      %s22 = int_to_ptr.vmem [resolvable:$true] %s21
      %27 = dma.hbm_to_vmem [thread:$0]  %s20, 1024, %s22, [#allocation4], 128, 128, 8
    $region13: #{tpu_custom_call.1} parent=1 // pred_fallthru
      _
    // Predicated region
    $region14: #{tpu_custom_call.1} parent=1 // pred_check
      _
    $region15: #{tpu_custom_call.1} parent=1 // pred_check_branch
      %29 = sbr.rel (0) target = $region17
    $region16: #{tpu_custom_call.1} parent=1 // pred_region
      %31 = dma.done [#allocation4], 1024
    $region17: #{tpu_custom_call.1} parent=1 // pred_fallthru
      _
    %v32 = vld [vmem:[%s1] sm:$0x1]
    %v33 = vadd.s32 %v32, 2147483648
    %vm35 = vcmp.ge.s32.totalorder %v33, 2362232012
    %s36 = sld [smem:[#allocation2]]
    %v37 = vld [vmem:[#allocation3] sm:$0xff]
    %v38 = vld [vmem:[#allocation3 + $0x8] sm:$0xff]
    %v39 = vld [vmem:[#allocation3 + $0x10] sm:$0xff]
    %v40 = vld [vmem:[#allocation3 + $0x18] sm:$0xff]
    %v41 = vld [vmem:[#allocation3 + $0x20] sm:$0xff]
    %v42 = vld [vmem:[#allocation3 + $0x28] sm:$0xff]
    %v43 = vld [vmem:[#allocation3 + $0x30] sm:$0xff]
    %v44 = vld [vmem:[#allocation3 + $0x38] sm:$0xff]
    %v45 = vsel %vm35, 1, 0
    %v46 = vperm.slane %v45, 0
    %vm47 = vcmp.eq.s32.totalorder %v46, 1
    %v48 = vstv %s36
    %v49 = vsel %vm47, %v37, %v48
    %v50 = vsel %vm47, %v38, %v48
    %v51 = vsel %vm47, %v39, %v48
    %v52 = vsel %vm47, %v40, %v48
    %v53 = vsel %vm47, %v41, %v48
    %v54 = vsel %vm47, %v42, %v48
    %v55 = vsel %vm47, %v43, %v48
    %v56 = vsel %vm47, %v44, %v48
    %57 = vst [vmem:[#allocation6] sm:$0xff] %v49
    %58 = vst [vmem:[#allocation6 + $0x8] sm:$0xff] %v50
    %59 = vst [vmem:[#allocation6 + $0x10] sm:$0xff] %v51
    %60 = vst [vmem:[#allocation6 + $0x18] sm:$0xff] %v52
    %61 = vst [vmem:[#allocation6 + $0x20] sm:$0xff] %v53
    %62 = vst [vmem:[#allocation6 + $0x28] sm:$0xff] %v54
    %63 = vst [vmem:[#allocation6 + $0x30] sm:$0xff] %v55
    %64 = vst [vmem:[#allocation6 + $0x38] sm:$0xff] %v56
    // Predicated region
    $region18: #{tpu_custom_call.1} parent=1 // pred_check
      _
    $region19: #{tpu_custom_call.1} parent=1 // pred_check_branch
      %66 = sbr.rel (0) target = $region21
    $region20: #{tpu_custom_call.1} parent=1 // pred_region
      %68 = vsyncadd [#allocation5], 0
      %s69 = sshll.u32 [#allocation6], 4
      %s70 = int_to_ptr.vmem [resolvable:$true] %s69
      %s71 = sshll.u32 %s3, 4
      %s72 = int_to_ptr.hbm [resolvable:$true] %s71
      %77 = dma.vmem_to_hbm [thread:$0]  %s70, 1024, %s72, [#allocation5], 128, 128, 8
    $region21: #{tpu_custom_call.1} parent=1 // pred_fallthru
      _
    // Predicated region
    $region22: #{tpu_custom_call.1} parent=1 // pred_check
      _
    $region23: #{tpu_custom_call.1} parent=1 // pred_check_branch
      %79 = sbr.rel (0) target = $region25
    $region24: #{tpu_custom_call.1} parent=1 // pred_region
      %81 = dma.done [#allocation5], 1024
    $region25: #{tpu_custom_call.1} parent=1 // pred_fallthru
      _
    %82 = vsyncpa [#allocation4], 1
    %83 = vsyncpa [#allocation5], 1

</llo_original>
